<compile_context>
chip_gen: v7x
topology: tpu7x:2x2x1
jax: 0.10.0
libtpu: 0.0.40
codegen_flags: <defaults>
</compile_context>

<pallas_src>
import functools
import math

import jax
import jax.numpy as jnp
from jax.experimental import pallas as pl
from jax.experimental.pallas import tpu as pltpu


_VIEWS = ('L-CC', 'L-MLO', 'R-CC', 'R-MLO')

_MIN_GRID_STEPS = 8      # enough steps to pipeline & split across v7x's 2 TCs
_ROW_ALIGN = 32          # row-block multiple (covers f32/bf16/int8 packing)
_MIN_LANE_WIDTH = 256    # below this, masked stores waste lanes -> jnp.pad


# --------------------------------------------------------------------------
# Helpers
# --------------------------------------------------------------------------
def _parse_pad(pad):
    pad = tuple(int(p) for p in pad)
    if len(pad) == 2:
        w_l, w_r = pad
        h_t = h_b = 0
    elif len(pad) == 4:
        w_l, w_r, h_t, h_b = pad
    else:
        # TODO(synk): F.pad 6/8-length pads (padding N/C dims) not implemented.
        raise NotImplementedError("only 2- or 4-length pad supported")
    if min(w_l, w_r, h_t, h_b) < 0:
        # TODO(synk): negative (cropping) pads not supported.
        raise NotImplementedError("negative padding not supported")
    return w_l, w_r, h_t, h_b


def _xla_pad(x, w_l, w_r, h_t, h_b):
    cfg = [(0, 0)] * (x.ndim - 2) + [(h_t, h_b), (w_l, w_r)]
    return jnp.pad(x, cfg)


def _vmem_budget_and_limit():
    """Generation-aware per-step tile budget (bytes) and vmem_limit_bytes."""
    try:
        cap = int(pltpu.get_tpu_info().vmem_capacity_bytes)
    except Exception:
        cap = 64 << 20                      # be safe: v7x per-TC capacity
    # ~100 MiB limit on 128 MiB parts (v5e/v6e), ~52 MiB on 64 MiB parts (v7x).
    vmem_limit = max(32 << 20, min(cap - (12 << 20), 100 << 20))
    budget = max(16 << 20, vmem_limit - (4 << 20))
    return budget, vmem_limit


# --------------------------------------------------------------------------
# Kernels
# --------------------------------------------------------------------------
def _width_pad_rows(x, w_l, w_r):
    """Zero-pad the last (lane) dim of an in-register tile."""
    if not (w_l or w_r):
        return x
    parts = []
    if w_l:
        parts.append(jnp.zeros(x.shape[:-1] + (w_l,), x.dtype))
    parts.append(x)
    if w_r:
        parts.append(jnp.zeros(x.shape[:-1] + (w_r,), x.dtype))
    return jnp.concatenate(parts, axis=-1)


def _pad_w_kernel(*refs, n, w_l, w_r):
    # Width-only pad on 2-D (rows, W) blocks: one lane-dense full-width store
    # per view; the interior is never written twice.
    for x_ref, o_ref in zip(refs[:n], refs[n:]):
        o_ref[...] = _width_pad_rows(x_ref[...], w_l, w_r)


def _pad_hw_kernel(*refs, n, w_l, w_r, h_t, h_b, H):
    # General pad on (tv, H, W) slabs: top/bottom border rows written with
    # direct zero stores, interior written once at its H offset (no full
    # padded-tile concatenate -> no unbudgeted H_out*W_out temporary).
    for x_ref, o_ref in zip(refs[:n], refs[n:]):
        tv, H_out, W_out = o_ref.shape
        if h_t:
            o_ref[:, :h_t, :] = jnp.zeros((tv, h_t, W_out), o_ref.dtype)
        o_ref[:, h_t:h_t + H, :] = _width_pad_rows(x_ref[...], w_l, w_r)
        if h_b:
            o_ref[:, h_t + H:, :] = jnp.zeros((tv, h_b, W_out), o_ref.dtype)


# --------------------------------------------------------------------------
# pallas_call wrappers
# --------------------------------------------------------------------------
def _pallas_pad_call(kernel, xs, in_spec_args, out_spec_args, out_shape_each,
                     grid, vmem_limit, bytes_accessed, pipeline_mode=None):
    n = len(xs)

    def mk_spec(args):
        block, index_map = args
        if pipeline_mode is None:
            return pl.BlockSpec(block, index_map)
        return pl.BlockSpec(block, index_map, pipeline_mode=pipeline_mode)

    outs = pl.pallas_call(
        kernel,
        out_shape=tuple(jax.ShapeDtypeStruct(out_shape_each, x.dtype)
                        for x in xs),
        grid=grid,
        in_specs=[mk_spec(in_spec_args) for _ in range(n)],
        out_specs=tuple(mk_spec(out_spec_args) for _ in range(n)),
        compiler_params=pltpu.CompilerParams(
            # Note: if profiling shows the grid is not split across v7x's two
            # TensorCores, pltpu.CORE_PARALLEL is the next thing to try here.
            dimension_semantics=("parallel",),
            vmem_limit_bytes=int(vmem_limit)),
        cost_estimate=pl.CostEstimate(
            flops=0, transcendentals=0, bytes_accessed=int(bytes_accessed)),
    )(*xs)
    if not isinstance(outs, (tuple, list)):
        outs = (outs,)
    return list(outs)


def _pad_width_only(xs, w_l, w_r, budget, vmem_limit):
    """h_t == h_b == 0: flatten to (rows, W) and row-tile (H-tiling for free)."""
    shape, dtype = xs[0].shape, xs[0].dtype
    W = shape[-1]
    W_out = W + w_l + w_r
    R = math.prod(shape[:-1]) if len(shape) > 1 else 1
    n = len(xs)
    xs2 = [x.reshape(R, W) for x in xs]

    itemsize = jnp.dtype(dtype).itemsize
    # Double-buffered in+out rows plus the width-concat temporary, all views.
    per_row = (2 * (W + W_out) + W_out) * itemsize * n
    tr = budget // per_row
    if tr < 8:
        return None  # absurdly wide rows: let XLA handle it
    if R >= _MIN_GRID_STEPS * _ROW_ALIGN:
        tr = min(tr, max(_ROW_ALIGN, R // _MIN_GRID_STEPS))
    if tr >= R:
        tr = R
    else:
        tr = max(_ROW_ALIGN, (tr // _ROW_ALIGN) * _ROW_ALIGN)
    grid = (pl.cdiv(R, tr),)

    kernel = functools.partial(_pad_w_kernel, n=n, w_l=w_l, w_r=w_r)
    outs = _pallas_pad_call(
        kernel, xs2,
        ((tr, W), lambda i: (i, 0)),
        ((tr, W_out), lambda i: (i, 0)),
        (R, W_out), grid, vmem_limit,
        bytes_accessed=n * R * (W + W_out) * itemsize)
    return [o.reshape(shape[:-1] + (W_out,)) for o in outs]


def _pad_general(xs, w_l, w_r, h_t, h_b, budget, vmem_limit):
    """Pads touching H: (V, H, W) slabs, borders + offset interior store."""
    shape, dtype = xs[0].shape, xs[0].dtype
    H, W = shape[-2:]
    H_out, W_out = H + h_t + h_b, W + w_l + w_r
    V = math.prod(shape[:-2]) if len(shape) > 2 else 1
    itemsize = jnp.dtype(dtype).itemsize

    temp = H * W_out if (w_l or w_r) else 0            # width-padded interior
    slab_db = (2 * (H * W + H_out * W_out) + temp) * itemsize  # double-buffered
    slab_sb = (H * W + H_out * W_out + temp) * itemsize        # single-buffered

    if slab_db <= budget:
        nv_max = max(1, budget // slab_db)
        slab_cost, pipeline_mode = slab_db, None
    elif slab_sb <= budget:
        # Huge slab (e.g. full-res mammogram on v7x's 64 MiB VMEM): drop to a
        # single-buffered pipeline rather than blowing physical VMEM.
        nv_max, slab_cost, pipeline_mode = 1, slab_sb, pl.Buffered(1)
    else:
        # TODO(synk): H-strip tiling for H-padded slabs that exceed VMEM even
        # single-buffered; rare for this module, fall back to XLA's pad.
        return None

    xs3 = [x.reshape(V, H, W) for x in xs]
    outs = []
    for c in range(0, len(xs3), nv_max):
        chunk = xs3[c:c + nv_max]
        n = len(chunk)
        tv = max(1, budget // (n * slab_cost))
        if V >= _MIN_GRID_STEPS:
            tv = min(tv, max(1, V // _MIN_GRID_STEPS))
        tv = min(tv, V)
        grid = (pl.cdiv(V, tv),)
        kernel = functools.partial(_pad_hw_kernel, n=n, w_l=w_l, w_r=w_r,
                                   h_t=h_t, h_b=h_b, H=H)
        outs += _pallas_pad_call(
            kernel, chunk,
            ((tv, H, W), lambda i: (i, 0, 0)),
            ((tv, H_out, W_out), lambda i: (i, 0, 0)),
            (V, H_out, W_out), grid, vmem_limit,
            bytes_accessed=n * V * (H * W + H_out * W_out) * itemsize,
            pipeline_mode=pipeline_mode)
    return [o.reshape(shape[:-2] + (H_out, W_out)) for o in outs]


def _pad_group(xs, w_l, w_r, h_t, h_b):
    budget, vmem_limit = _vmem_budget_and_limit()
    if h_t == 0 and h_b == 0:
        res = _pad_width_only(xs, w_l, w_r, budget, vmem_limit)
    else:
        res = _pad_general(xs, w_l, w_r, h_t, h_b, budget, vmem_limit)
    if res is None:
        res = [_xla_pad(x, w_l, w_r, h_t, h_b) for x in xs]
    return res


# --------------------------------------------------------------------------
# Public wrapper == AllViewsPad.forward
# --------------------------------------------------------------------------
def all_views_pad(x, pad, *, min_lane_width=_MIN_LANE_WIDTH):
    """Pallas equivalent of AllViewsPad.forward(x, pad)."""
    w_l, w_r, h_t, h_b = _parse_pad(pad)
    arrays = {name: jnp.asarray(x[name]) for name in _VIEWS}

    if w_l == w_r == h_t == h_b == 0:
        return {name: arrays[name] for name in _VIEWS}

    # Views with identical (shape, dtype) share ONE pallas_call, each as a
    # separate in/out ref on the same grid (no stack/unstack HBM traffic).
    groups = {}
    for name in _VIEWS:
        key = (arrays[name].shape, jnp.dtype(arrays[name].dtype).name)
        groups.setdefault(key, []).append(name)

    out = {}
    for (shape, _), names in groups.items():
        w_out = shape[-1] + w_l + w_r
        if w_out < min_lane_width:
            # Lane-sparse outputs: XLA's pad beats a masked-store kernel.
            for name in names:
                out[name] = _xla_pad(arrays[name], w_l, w_r, h_t, h_b)
            continue
        padded = _pad_group([arrays[n] for n in names], w_l, w_r, h_t, h_b)
        for name, p in zip(names, padded):
            out[name] = p
    return {name: out[name] for name in _VIEWS}


# --------------------------------------------------------------------------
# Self-test
# --------------------------------------------------------------------------
if __name__ == "__main__":
    key = jax.random.PRNGKey(0)
    N, C, H, W = 2, 4, 16, 16
    views = {}
    for name in _VIEWS:
        key, sub = jax.random.split(key)
        views[name] = jax.random.normal(sub, (N, C, H, W), dtype=jnp.float32)

    def check(out, inputs, pad):
        p = _parse_pad(pad)
        for name, v in inputs.items():
            ref = _xla_pad(v, *p)
            assert out[name].shape == ref.shape, (name, out[name].shape, ref.shape)
            assert jnp.array_equal(out[name], ref), name

    # 1) general H+W pad through the Pallas slab kernel (force small width in).
    pad4 = (1, 2, 3, 4)
    out = jax.tree_util.tree_map(jax.block_until_ready,
                                 all_views_pad(views, pad4, min_lane_width=0))
    check(out, views, pad4)

    # 2) width-only pad through the Pallas row kernel.
    pad2 = (2, 1)
    out = jax.tree_util.tree_map(jax.block_until_ready,
                                 all_views_pad(views, pad2, min_lane_width=0))
    check(out, views, pad2)

    # 3) height-only pad (pure offset-copy path, no lane concat).
    padh = (0, 0, 2, 1)
    out = jax.tree_util.tree_map(jax.block_until_ready,
                                 all_views_pad(views, padh, min_lane_width=0))
    check(out, views, padh)

    # 4) default path at lane-sparse width -> jnp.pad fallback.
    out = jax.tree_util.tree_map(jax.block_until_ready,
                                 all_views_pad(views, pad4))
    check(out, views, pad4)

    # 5) lane-dense width (mammogram-style) through the default Pallas path.
    key, *subs = jax.random.split(key, 5)
    wide = {name: jax.random.normal(s, (1, 2, 32, 256), dtype=jnp.float32)
            for name, s in zip(_VIEWS, subs)}
    padw = (3, 5)
    outw = jax.tree_util.tree_map(jax.block_until_ready,
                                  all_views_pad(wide, padw))
    check(outw, wide, padw)

    print("KERNEL_OK")
</pallas_src>

<mosaic_0001>
module attributes {stable_mosaic.version = 11 : i64} {
  func.func @_pad_hw_kernel(%arg0: i32, %arg1: memref<1x16x16xf32, #tpu.memory_space<vmem>>, %arg2: memref<1x16x16xf32, #tpu.memory_space<vmem>>, %arg3: memref<1x16x16xf32, #tpu.memory_space<vmem>>, %arg4: memref<1x16x16xf32, #tpu.memory_space<vmem>>, %arg5: memref<1x23x19xf32, #tpu.memory_space<vmem>>, %arg6: memref<1x23x19xf32, #tpu.memory_space<vmem>>, %arg7: memref<1x23x19xf32, #tpu.memory_space<vmem>>, %arg8: memref<1x23x19xf32, #tpu.memory_space<vmem>>) attributes {dimension_semantics = [#tpu.dimension_semantics<parallel>], iteration_bounds = array<i64: 8>, scalar_prefetch = 0 : i64, scratch_operands = 0 : i64, tpu.core_type = #tpu.core_type<tc>, window_params = [{transform_indices = @transform_0, window_bounds = array<i64: 1, 16, 16>}, {transform_indices = @transform_1, window_bounds = array<i64: 1, 16, 16>}, {transform_indices = @transform_2, window_bounds = array<i64: 1, 16, 16>}, {transform_indices = @transform_3, window_bounds = array<i64: 1, 16, 16>}, {transform_indices = @transform_4, window_bounds = array<i64: 1, 23, 19>}, {transform_indices = @transform_5, window_bounds = array<i64: 1, 23, 19>}, {transform_indices = @transform_6, window_bounds = array<i64: 1, 23, 19>}, {transform_indices = @transform_7, window_bounds = array<i64: 1, 23, 19>}]} {
    %cst = arith.constant 0.000000e+00 : f32
    %0 = vector.broadcast %cst : f32 to vector<1x3x19xf32>
    %c0 = arith.constant 0 : index
    %c0_0 = arith.constant 0 : index
    %c0_1 = arith.constant 0 : index
    %1 = vector.load %arg5[%c0, %c0_0, %c0_1] : memref<1x23x19xf32, #tpu.memory_space<vmem>>, vector<1x3x19xf32>
    tpu.vector_store %arg5[%c0, %c0_0, %c0_1], %0 {strides = array<i32>} : memref<1x23x19xf32, #tpu.memory_space<vmem>>, vector<1x3x19xf32>,
    %c0_2 = arith.constant 0 : index
    %c0_3 = arith.constant 0 : index
    %c0_4 = arith.constant 0 : index
    %2 = vector.load %arg1[%c0_2, %c0_3, %c0_4] : memref<1x16x16xf32, #tpu.memory_space<vmem>>, vector<1x16x16xf32>
    %cst_5 = arith.constant 0.000000e+00 : f32
    %3 = vector.broadcast %cst_5 : f32 to vector<1x16x1xf32>
    %cst_6 = arith.constant 0.000000e+00 : f32
    %4 = vector.broadcast %cst_6 : f32 to vector<1x16x2xf32>
    %5 = tpu.concatenate %3, %2, %4 in 2 : vector<1x16x1xf32>, vector<1x16x16xf32>, vector<1x16x2xf32> -> vector<1x16x19xf32>
    %c0_7 = arith.constant 0 : index
    %c3 = arith.constant 3 : index
    %c0_8 = arith.constant 0 : index
    %6 = vector.load %arg5[%c0_7, %c3, %c0_8] : memref<1x23x19xf32, #tpu.memory_space<vmem>>, vector<1x16x19xf32>
    tpu.vector_store %arg5[%c0_7, %c3, %c0_8], %5 {strides = array<i32>} : memref<1x23x19xf32, #tpu.memory_space<vmem>>, vector<1x16x19xf32>,
    %cst_9 = arith.constant 0.000000e+00 : f32
    %7 = vector.broadcast %cst_9 : f32 to vector<1x4x19xf32>
    %c0_10 = arith.constant 0 : index
    %c19 = arith.constant 19 : index
    %c0_11 = arith.constant 0 : index
    %8 = vector.load %arg5[%c0_10, %c19, %c0_11] : memref<1x23x19xf32, #tpu.memory_space<vmem>>, vector<1x4x19xf32>
    tpu.vector_store %arg5[%c0_10, %c19, %c0_11], %7 {strides = array<i32>} : memref<1x23x19xf32, #tpu.memory_space<vmem>>, vector<1x4x19xf32>,
    %cst_12 = arith.constant 0.000000e+00 : f32
    %9 = vector.broadcast %cst_12 : f32 to vector<1x3x19xf32>
    %c0_13 = arith.constant 0 : index
    %c0_14 = arith.constant 0 : index
    %c0_15 = arith.constant 0 : index
    %10 = vector.load %arg6[%c0_13, %c0_14, %c0_15] : memref<1x23x19xf32, #tpu.memory_space<vmem>>, vector<1x3x19xf32>
    tpu.vector_store %arg6[%c0_13, %c0_14, %c0_15], %9 {strides = array<i32>} : memref<1x23x19xf32, #tpu.memory_space<vmem>>, vector<1x3x19xf32>,
    %c0_16 = arith.constant 0 : index
    %c0_17 = arith.constant 0 : index
    %c0_18 = arith.constant 0 : index
    %11 = vector.load %arg2[%c0_16, %c0_17, %c0_18] : memref<1x16x16xf32, #tpu.memory_space<vmem>>, vector<1x16x16xf32>
    %cst_19 = arith.constant 0.000000e+00 : f32
    %12 = vector.broadcast %cst_19 : f32 to vector<1x16x1xf32>
    %cst_20 = arith.constant 0.000000e+00 : f32
    %13 = vector.broadcast %cst_20 : f32 to vector<1x16x2xf32>
    %14 = tpu.concatenate %12, %11, %13 in 2 : vector<1x16x1xf32>, vector<1x16x16xf32>, vector<1x16x2xf32> -> vector<1x16x19xf32>
    %c0_21 = arith.constant 0 : index
    %c3_22 = arith.constant 3 : index
    %c0_23 = arith.constant 0 : index
    %15 = vector.load %arg6[%c0_21, %c3_22, %c0_23] : memref<1x23x19xf32, #tpu.memory_space<vmem>>, vector<1x16x19xf32>
    tpu.vector_store %arg6[%c0_21, %c3_22, %c0_23], %14 {strides = array<i32>} : memref<1x23x19xf32, #tpu.memory_space<vmem>>, vector<1x16x19xf32>,
    %cst_24 = arith.constant 0.000000e+00 : f32
    %16 = vector.broadcast %cst_24 : f32 to vector<1x4x19xf32>
    %c0_25 = arith.constant 0 : index
    %c19_26 = arith.constant 19 : index
    %c0_27 = arith.constant 0 : index
    %17 = vector.load %arg6[%c0_25, %c19_26, %c0_27] : memref<1x23x19xf32, #tpu.memory_space<vmem>>, vector<1x4x19xf32>
    tpu.vector_store %arg6[%c0_25, %c19_26, %c0_27], %16 {strides = array<i32>} : memref<1x23x19xf32, #tpu.memory_space<vmem>>, vector<1x4x19xf32>,
    %cst_28 = arith.constant 0.000000e+00 : f32
    %18 = vector.broadcast %cst_28 : f32 to vector<1x3x19xf32>
    %c0_29 = arith.constant 0 : index
    %c0_30 = arith.constant 0 : index
    %c0_31 = arith.constant 0 : index
    %19 = vector.load %arg7[%c0_29, %c0_30, %c0_31] : memref<1x23x19xf32, #tpu.memory_space<vmem>>, vector<1x3x19xf32>
    tpu.vector_store %arg7[%c0_29, %c0_30, %c0_31], %18 {strides = array<i32>} : memref<1x23x19xf32, #tpu.memory_space<vmem>>, vector<1x3x19xf32>,
    %c0_32 = arith.constant 0 : index
    %c0_33 = arith.constant 0 : index
    %c0_34 = arith.constant 0 : index
    %20 = vector.load %arg3[%c0_32, %c0_33, %c0_34] : memref<1x16x16xf32, #tpu.memory_space<vmem>>, vector<1x16x16xf32>
    %cst_35 = arith.constant 0.000000e+00 : f32
    %21 = vector.broadcast %cst_35 : f32 to vector<1x16x1xf32>
    %cst_36 = arith.constant 0.000000e+00 : f32
    %22 = vector.broadcast %cst_36 : f32 to vector<1x16x2xf32>
    %23 = tpu.concatenate %21, %20, %22 in 2 : vector<1x16x1xf32>, vector<1x16x16xf32>, vector<1x16x2xf32> -> vector<1x16x19xf32>
    %c0_37 = arith.constant 0 : index
    %c3_38 = arith.constant 3 : index
    %c0_39 = arith.constant 0 : index
    %24 = vector.load %arg7[%c0_37, %c3_38, %c0_39] : memref<1x23x19xf32, #tpu.memory_space<vmem>>, vector<1x16x19xf32>
    tpu.vector_store %arg7[%c0_37, %c3_38, %c0_39], %23 {strides = array<i32>} : memref<1x23x19xf32, #tpu.memory_space<vmem>>, vector<1x16x19xf32>,
    %cst_40 = arith.constant 0.000000e+00 : f32
    %25 = vector.broadcast %cst_40 : f32 to vector<1x4x19xf32>
    %c0_41 = arith.constant 0 : index
    %c19_42 = arith.constant 19 : index
    %c0_43 = arith.constant 0 : index
    %26 = vector.load %arg7[%c0_41, %c19_42, %c0_43] : memref<1x23x19xf32, #tpu.memory_space<vmem>>, vector<1x4x19xf32>
    tpu.vector_store %arg7[%c0_41, %c19_42, %c0_43], %25 {strides = array<i32>} : memref<1x23x19xf32, #tpu.memory_space<vmem>>, vector<1x4x19xf32>,
    %cst_44 = arith.constant 0.000000e+00 : f32
    %27 = vector.broadcast %cst_44 : f32 to vector<1x3x19xf32>
    %c0_45 = arith.constant 0 : index
    %c0_46 = arith.constant 0 : index
    %c0_47 = arith.constant 0 : index
    %28 = vector.load %arg8[%c0_45, %c0_46, %c0_47] : memref<1x23x19xf32, #tpu.memory_space<vmem>>, vector<1x3x19xf32>
    tpu.vector_store %arg8[%c0_45, %c0_46, %c0_47], %27 {strides = array<i32>} : memref<1x23x19xf32, #tpu.memory_space<vmem>>, vector<1x3x19xf32>,
    %c0_48 = arith.constant 0 : index
    %c0_49 = arith.constant 0 : index
    %c0_50 = arith.constant 0 : index
    %29 = vector.load %arg4[%c0_48, %c0_49, %c0_50] : memref<1x16x16xf32, #tpu.memory_space<vmem>>, vector<1x16x16xf32>
    %cst_51 = arith.constant 0.000000e+00 : f32
    %30 = vector.broadcast %cst_51 : f32 to vector<1x16x1xf32>
    %cst_52 = arith.constant 0.000000e+00 : f32
    %31 = vector.broadcast %cst_52 : f32 to vector<1x16x2xf32>
    %32 = tpu.concatenate %30, %29, %31 in 2 : vector<1x16x1xf32>, vector<1x16x16xf32>, vector<1x16x2xf32> -> vector<1x16x19xf32>
    %c0_53 = arith.constant 0 : index
    %c3_54 = arith.constant 3 : index
    %c0_55 = arith.constant 0 : index
    %33 = vector.load %arg8[%c0_53, %c3_54, %c0_55] : memref<1x23x19xf32, #tpu.memory_space<vmem>>, vector<1x16x19xf32>
    tpu.vector_store %arg8[%c0_53, %c3_54, %c0_55], %32 {strides = array<i32>} : memref<1x23x19xf32, #tpu.memory_space<vmem>>, vector<1x16x19xf32>,
    %cst_56 = arith.constant 0.000000e+00 : f32
    %34 = vector.broadcast %cst_56 : f32 to vector<1x4x19xf32>
    %c0_57 = arith.constant 0 : index
    %c19_58 = arith.constant 19 : index
    %c0_59 = arith.constant 0 : index
    %35 = vector.load %arg8[%c0_57, %c19_58, %c0_59] : memref<1x23x19xf32, #tpu.memory_space<vmem>>, vector<1x4x19xf32>
    tpu.vector_store %arg8[%c0_57, %c19_58, %c0_59], %34 {strides = array<i32>} : memref<1x23x19xf32, #tpu.memory_space<vmem>>, vector<1x4x19xf32>,
    return
  }
  func.func @transform_0(%arg0: i32) -> (i32, i32, i32) {
    %c0_i32 = arith.constant 0 : i32
    %c0_i32_0 = arith.constant 0 : i32
    %c0_i32_1 = arith.constant 0 : i32
    return %arg0, %c0_i32, %c0_i32_0 : i32, i32, i32
  }
  func.func @transform_1(%arg0: i32) -> (i32, i32, i32) {
    %c0_i32 = arith.constant 0 : i32
    %c0_i32_0 = arith.constant 0 : i32
    %c0_i32_1 = arith.constant 0 : i32
    return %arg0, %c0_i32, %c0_i32_0 : i32, i32, i32
  }
  func.func @transform_2(%arg0: i32) -> (i32, i32, i32) {
    %c0_i32 = arith.constant 0 : i32
    %c0_i32_0 = arith.constant 0 : i32
    %c0_i32_1 = arith.constant 0 : i32
    return %arg0, %c0_i32, %c0_i32_0 : i32, i32, i32
  }
  func.func @transform_3(%arg0: i32) -> (i32, i32, i32) {
    %c0_i32 = arith.constant 0 : i32
    %c0_i32_0 = arith.constant 0 : i32
    %c0_i32_1 = arith.constant 0 : i32
    return %arg0, %c0_i32, %c0_i32_0 : i32, i32, i32
  }
  func.func @transform_4(%arg0: i32) -> (i32, i32, i32) {
    %c0_i32 = arith.constant 0 : i32
    %c0_i32_0 = arith.constant 0 : i32
    %c0_i32_1 = arith.constant 0 : i32
    return %arg0, %c0_i32, %c0_i32_0 : i32, i32, i32
  }
  func.func @transform_5(%arg0: i32) -> (i32, i32, i32) {
    %c0_i32 = arith.constant 0 : i32
    %c0_i32_0 = arith.constant 0 : i32
    %c0_i32_1 = arith.constant 0 : i32
    return %arg0, %c0_i32, %c0_i32_0 : i32, i32, i32
  }
  func.func @transform_6(%arg0: i32) -> (i32, i32, i32) {
    %c0_i32 = arith.constant 0 : i32
    %c0_i32_0 = arith.constant 0 : i32
    %c0_i32_1 = arith.constant 0 : i32
    return %arg0, %c0_i32, %c0_i32_0 : i32, i32, i32
  }
  func.func @transform_7(%arg0: i32) -> (i32, i32, i32) {
    %c0_i32 = arith.constant 0 : i32
    %c0_i32_0 = arith.constant 0 : i32
    %c0_i32_1 = arith.constant 0 : i32
    return %arg0, %c0_i32, %c0_i32_0 : i32, i32, i32
  }
}

</mosaic_0001>

<llo_original>
// kernel: tpu_custom_call.1
$region0: #{tpu_custom_call.1}
  #allocation0 [shape = 'u32[]', space=smem, size = 0x4, offset = 0x4, fixed_abs, tag = 'smem constant byte address 0x4 - core index']
  #allocation1 [shape = 'u32[144,128]{1,0:T(1,128)}', space=vmem, size = 0x12000, scoped, tag = 'internal scratch']
  %s0 = inlined_call_operand.hbm [shape: f32[8,16,16], index: 0, kind: input, shape index: {}]
  %s1 = inlined_call_operand.hbm [shape: f32[8,16,16], index: 1, kind: input, shape index: {}]
  %s2 = inlined_call_operand.hbm [shape: f32[8,16,16], index: 2, kind: input, shape index: {}]
  %s3 = inlined_call_operand.hbm [shape: f32[8,16,16], index: 3, kind: input, shape index: {}]
  %s4 = inlined_call_operand.vmem [shape: f32[8,23,19], index: 4, kind: output, shape index: {0}]
  %s5 = inlined_call_operand.vmem [shape: f32[8,23,19], index: 5, kind: output, shape index: {1}]
  %s6 = inlined_call_operand.vmem [shape: f32[8,23,19], index: 6, kind: output, shape index: {2}]
  %s7 = inlined_call_operand.vmem [shape: f32[8,23,19], index: 7, kind: output, shape index: {3}]
  %8 = xla_tuple %s4, %s5, %s6, %s7
  %s9 = sld [smem:[#allocation0]]
  $region89: #{tpu_custom_call.1} parent=0
    _
  %s11 = ssub.s32 1, %s9
  %s12 = scalar_select 0, %s11, %s9
  $region1: #{tpu_custom_call.1} parent=0
    #allocation2 [shape = 'u8[16384]{0}', space=vmem, size = 0x4000, scoped, tag = 'input window, operand 0']
    #allocation3 [shape = 's32[2]{0}', space=sflag, size = 0x8, scoped, tag = 'scoped memory for tpu_custom_call.1']
    #allocation4 [shape = 'u8[16384]{0}', space=vmem, size = 0x4000, scoped, tag = 'input window, operand 1']
    #allocation5 [shape = 's32[2]{0}', space=sflag, size = 0x8, scoped, tag = 'scoped memory for tpu_custom_call.1']
    #allocation6 [shape = 'u8[16384]{0}', space=vmem, size = 0x4000, scoped, tag = 'input window, operand 2']
    #allocation7 [shape = 'u8[16384]{0}', space=vmem, size = 0x4000, scoped, tag = 'input window, operand 3']
    #allocation8 [shape = 's32[2]{0}', space=sflag, size = 0x8, scoped, tag = 'scoped memory for tpu_custom_call.1']
    %13 = vsyncpa [#allocation3], 0
    %s14 = scalar_lea.sflag [#allocation3], 1
    %15 = vsyncpa %s14, 0
    %16 = vsyncpa [#allocation5], 0
    %s17 = scalar_lea.sflag [#allocation5], 1
    %18 = vsyncpa %s17, 0
    %19 = vsyncpa [#allocation8], 0
    %s20 = scalar_lea.sflag [#allocation8], 1
    %21 = vsyncpa %s20, 0
    loop: start=0, step=1, limit=10
    $region2: #{tpu_custom_call.1} parent=1 // loop_pre_header
      _
    $region3: #{tpu_custom_call.1} parent=1 // loop_header
      %s23 = sphi 0, %s27
      %p24 = scmp.ge.s32.totalorder %s23, 10
      %s33 = sphi 0, %s35
      %s36 = sphi 0, %s33
      %s37 = sphi 0, %s36
      %s53 = sphi 0, %s37
      %s59 = sphi 0, %s61
      %s62 = sphi 0, %s59
      %s63 = sphi 0, %s62
      %s79 = sphi 0, %s63
      %s85 = sphi 0, %s87
      %s88 = sphi 0, %s85
      %s89 = sphi 0, %s88
      %s105 = sphi 0, %s89
      %s111 = sphi 0, %s113
      %s114 = sphi 0, %s111
      %s115 = sphi 0, %s114
      %s131 = sphi 0, %s115
      %s137 = sphi 0, %s139
      %s140 = sphi 0, %s137
      %s141 = sphi 0, %s140
      %s157 = sphi 0, %s141
      %s163 = sphi 0, %s165
      %s166 = sphi 0, %s163
      %s167 = sphi 0, %s166
      %s183 = sphi 0, %s167
      %s189 = sphi 0, %s191
      %s192 = sphi 0, %s189
      %s193 = sphi 0, %s192
      %s209 = sphi 0, %s193
      %s215 = sphi 0, %s217
      %s218 = sphi 0, %s215
      %s219 = sphi 0, %s218
      %s235 = sphi 0, %s219
    $region4: #{tpu_custom_call.1} parent=1 // loop_header_branch
      %26 = sbr.rel (%p24) target = $region8
    $region5: #{tpu_custom_call.1} parent=1 // loop_body
      %s28 = ssub.s32 %s23, 1
      %s29 = ssub.s32 %s23, 2
      %s30 = sadd.s32 %s23, 1
      %s31 = ssub.s32 %s23, %s30
      %p32 = scmp.eq.s32.totalorder %s31, 0
      %s34 = sadd.s32 %s33, 1
      %s35 = scalar_select %p32, %s33, %s34
      %p38 = pneg %p32
      %p39 = scmp.eq.s32.totalorder %s23, 7
      %p40 = por %p38, %p39
      %p41 = scmp.ne.s32.totalorder %s33, %s36
      %p42 = scmp.eq.s32.totalorder %s23, 0
      %p43 = por %p41, %p42
      %p44 = scmp.ne.s32.totalorder %s33, %s36
      %p45 = scmp.eq.s32.totalorder %s28, 7
      %p46 = por %p44, %p45
      %p47 = scmp.ne.s32.totalorder %s36, %s37
      %p48 = scmp.eq.s32.totalorder %s28, 0
      %p49 = por %p47, %p48
      %p50 = scmp.ne.s32.totalorder %s36, %s37
      %p51 = scmp.eq.s32.totalorder %s29, 7
      %p52 = por %p50, %p51
      %p54 = scmp.ne.s32.totalorder %s37, %s53
      %p55 = scmp.eq.s32.totalorder %s29, 0
      %p56 = por %p54, %p55
      %s57 = ssub.s32 %s23, %s30
      %p58 = scmp.eq.s32.totalorder %s57, 0
      %s60 = sadd.s32 %s59, 1
      %s61 = scalar_select %p58, %s59, %s60
      %p64 = pneg %p58
      %p65 = scmp.eq.s32.totalorder %s23, 7
      %p66 = por %p64, %p65
      %p67 = scmp.ne.s32.totalorder %s59, %s62
      %p68 = scmp.eq.s32.totalorder %s23, 0
      %p69 = por %p67, %p68
      %p70 = scmp.ne.s32.totalorder %s59, %s62
      %p71 = scmp.eq.s32.totalorder %s28, 7
      %p72 = por %p70, %p71
      %p73 = scmp.ne.s32.totalorder %s62, %s63
      %p74 = scmp.eq.s32.totalorder %s28, 0
      %p75 = por %p73, %p74
      %p76 = scmp.ne.s32.totalorder %s62, %s63
      %p77 = scmp.eq.s32.totalorder %s29, 7
      %p78 = por %p76, %p77
      %p80 = scmp.ne.s32.totalorder %s63, %s79
      %p81 = scmp.eq.s32.totalorder %s29, 0
      %p82 = por %p80, %p81
      %s83 = ssub.s32 %s23, %s30
      %p84 = scmp.eq.s32.totalorder %s83, 0
      %s86 = sadd.s32 %s85, 1
      %s87 = scalar_select %p84, %s85, %s86
      %p90 = pneg %p84
      %p91 = scmp.eq.s32.totalorder %s23, 7
      %p92 = por %p90, %p91
      %p93 = scmp.ne.s32.totalorder %s85, %s88
      %p94 = scmp.eq.s32.totalorder %s23, 0
      %p95 = por %p93, %p94
      %p96 = scmp.ne.s32.totalorder %s85, %s88
      %p97 = scmp.eq.s32.totalorder %s28, 7
      %p98 = por %p96, %p97
      %p99 = scmp.ne.s32.totalorder %s88, %s89
      %p100 = scmp.eq.s32.totalorder %s28, 0
      %p101 = por %p99, %p100
      %p102 = scmp.ne.s32.totalorder %s88, %s89
      %p103 = scmp.eq.s32.totalorder %s29, 7
      %p104 = por %p102, %p103
      %p106 = scmp.ne.s32.totalorder %s89, %s105
      %p107 = scmp.eq.s32.totalorder %s29, 0
      %p108 = por %p106, %p107
      %s109 = ssub.s32 %s23, %s30
      %p110 = scmp.eq.s32.totalorder %s109, 0
      %s112 = sadd.s32 %s111, 1
      %s113 = scalar_select %p110, %s111, %s112
      %p116 = pneg %p110
      %p117 = scmp.eq.s32.totalorder %s23, 7
      %p118 = por %p116, %p117
      %p119 = scmp.ne.s32.totalorder %s111, %s114
      %p120 = scmp.eq.s32.totalorder %s23, 0
      %p121 = por %p119, %p120
      %p122 = scmp.ne.s32.totalorder %s111, %s114
      %p123 = scmp.eq.s32.totalorder %s28, 7
      %p124 = por %p122, %p123
      %p125 = scmp.ne.s32.totalorder %s114, %s115
      %p126 = scmp.eq.s32.totalorder %s28, 0
      %p127 = por %p125, %p126
      %p128 = scmp.ne.s32.totalorder %s114, %s115
      %p129 = scmp.eq.s32.totalorder %s29, 7
      %p130 = por %p128, %p129
      %p132 = scmp.ne.s32.totalorder %s115, %s131
      %p133 = scmp.eq.s32.totalorder %s29, 0
      %p134 = por %p132, %p133
      %s135 = ssub.s32 %s23, %s30
      %p136 = scmp.eq.s32.totalorder %s135, 0
      %s138 = sadd.s32 %s137, 1
      %s139 = scalar_select %p136, %s137, %s138
      %p142 = pneg %p136
      %p143 = scmp.eq.s32.totalorder %s23, 7
      %p144 = por %p142, %p143
      %p145 = scmp.ne.s32.totalorder %s137, %s140
      %p146 = scmp.eq.s32.totalorder %s23, 0
      %p147 = por %p145, %p146
      %p148 = scmp.ne.s32.totalorder %s137, %s140
      %p149 = scmp.eq.s32.totalorder %s28, 7
      %p150 = por %p148, %p149
      %p151 = scmp.ne.s32.totalorder %s140, %s141
      %p152 = scmp.eq.s32.totalorder %s28, 0
      %p153 = por %p151, %p152
      %p154 = scmp.ne.s32.totalorder %s140, %s141
      %p155 = scmp.eq.s32.totalorder %s29, 7
      %p156 = por %p154, %p155
      %p158 = scmp.ne.s32.totalorder %s141, %s157
      %p159 = scmp.eq.s32.totalorder %s29, 0
      %p160 = por %p158, %p159
      %s161 = ssub.s32 %s23, %s30
      %p162 = scmp.eq.s32.totalorder %s161, 0
      %s164 = sadd.s32 %s163, 1
      %s165 = scalar_select %p162, %s163, %s164
      %p168 = pneg %p162
      %p169 = scmp.eq.s32.totalorder %s23, 7
      %p170 = por %p168, %p169
      %p171 = scmp.ne.s32.totalorder %s163, %s166
      %p172 = scmp.eq.s32.totalorder %s23, 0
      %p173 = por %p171, %p172
      %p174 = scmp.ne.s32.totalorder %s163, %s166
      %p175 = scmp.eq.s32.totalorder %s28, 7
      %p176 = por %p174, %p175
      %p177 = scmp.ne.s32.totalorder %s166, %s167
      %p178 = scmp.eq.s32.totalorder %s28, 0
      %p179 = por %p177, %p178
      %p180 = scmp.ne.s32.totalorder %s166, %s167
      %p181 = scmp.eq.s32.totalorder %s29, 7
      %p182 = por %p180, %p181
      %p184 = scmp.ne.s32.totalorder %s167, %s183
      %p185 = scmp.eq.s32.totalorder %s29, 0
      %p186 = por %p184, %p185
      %s187 = ssub.s32 %s23, %s30
      %p188 = scmp.eq.s32.totalorder %s187, 0
      %s190 = sadd.s32 %s189, 1
      %s191 = scalar_select %p188, %s189, %s190
      %p194 = pneg %p188
      %p195 = scmp.eq.s32.totalorder %s23, 7
      %p196 = por %p194, %p195
      %p197 = scmp.ne.s32.totalorder %s189, %s192
      %p198 = scmp.eq.s32.totalorder %s23, 0
      %p199 = por %p197, %p198
      %p200 = scmp.ne.s32.totalorder %s189, %s192
      %p201 = scmp.eq.s32.totalorder %s28, 7
      %p202 = por %p200, %p201
      %p203 = scmp.ne.s32.totalorder %s192, %s193
      %p204 = scmp.eq.s32.totalorder %s28, 0
      %p205 = por %p203, %p204
      %p206 = scmp.ne.s32.totalorder %s192, %s193
      %p207 = scmp.eq.s32.totalorder %s29, 7
      %p208 = por %p206, %p207
      %p210 = scmp.ne.s32.totalorder %s193, %s209
      %p211 = scmp.eq.s32.totalorder %s29, 0
      %p212 = por %p210, %p211
      %s213 = ssub.s32 %s23, %s30
      %p214 = scmp.eq.s32.totalorder %s213, 0
      %s216 = sadd.s32 %s215, 1
      %s217 = scalar_select %p214, %s215, %s216
      %p220 = pneg %p214
      %p221 = scmp.eq.s32.totalorder %s23, 7
      %p222 = por %p220, %p221
      %p223 = scmp.ne.s32.totalorder %s215, %s218
      %p224 = scmp.eq.s32.totalorder %s23, 0
      %p225 = por %p223, %p224
      %p226 = scmp.ne.s32.totalorder %s215, %s218
      %p227 = scmp.eq.s32.totalorder %s28, 7
      %p228 = por %p226, %p227
      %p229 = scmp.ne.s32.totalorder %s218, %s219
      %p230 = scmp.eq.s32.totalorder %s28, 0
      %p231 = por %p229, %p230
      %p232 = scmp.ne.s32.totalorder %s218, %s219
      %p233 = scmp.eq.s32.totalorder %s29, 7
      %p234 = por %p232, %p233
      %p236 = scmp.ne.s32.totalorder %s219, %s235
      %p237 = scmp.eq.s32.totalorder %s29, 0
      %p238 = por %p236, %p237
      %p239 = scmp.le.s32.totalorder 1, %s23
      %p240 = scmp.lt.s32.totalorder %s23, 9
      %p241 = pnand %p239, %p240
      %p242 = pneg %p241
      // Predicated region
      $region9: #{tpu_custom_call.1} parent=5 // pred_check
        _
      $region10: #{tpu_custom_call.1} parent=5 // pred_check_branch
        %244 = sbr.rel (%p241) target = $region12
      $region11: #{tpu_custom_call.1} parent=5 // pred_region
        %s245 = ssub.s32 %s23, 1
      $region12: #{tpu_custom_call.1} parent=5 // pred_fallthru
        _
      %p246 = scmp.lt.s32.totalorder %s23, 8
      // Predicated region
      $region13: #{tpu_custom_call.1} parent=5 // pred_check
        %p247 = pneg %p246
      $region14: #{tpu_custom_call.1} parent=5 // pred_check_branch
        %249 = sbr.rel (%p247) target = $region16
      $region15: #{tpu_custom_call.1} parent=5 // pred_region
        // Predicated region
        $region17: #{tpu_custom_call.1} parent=15 // pred_check
          %p250 = pneg %p43
        $region18: #{tpu_custom_call.1} parent=15 // pred_check_branch
          %252 = sbr.rel (%p250) target = $region20
        $region19: #{tpu_custom_call.1} parent=15 // pred_region
          %s253 = sand.u32 %s33, 1
          %s254 = scalar_lea.sflag [#allocation3], %s253
          %s255 = sand.u32 %s33, 1
          %s256 = smul.addr %s255, 16
          %s257 = scalar_lea.vmem [#allocation2], %s256
          %s259 = ssub.s32 256, 256
          %260 = vsyncadd %s254, %s259
          %s261 = smul.addr %s23, 2
          %s262 = smul.addr %s261, 128
          %s263 = scalar_lea.hbm %s0, %s262
          %s264 = sshll.u32 %s257, 4
          %s265 = int_to_ptr.vmem [resolvable:$true] %s264
          %270 = dma.hbm_to_vmem [thread:$0]  %s263, 256, %s265, %s254, 128, 128, 8
        $region20: #{tpu_custom_call.1} parent=15 // pred_fallthru
          _
        // Predicated region
        $region21: #{tpu_custom_call.1} parent=15 // pred_check
          %p271 = pneg %p69
        $region22: #{tpu_custom_call.1} parent=15 // pred_check_branch
          %273 = sbr.rel (%p271) target = $region24
        $region23: #{tpu_custom_call.1} parent=15 // pred_region
          %s274 = sand.u32 %s23, 1
          %s275 = scalar_lea.sflag [#allocation5], %s274
          %s276 = sand.u32 %s59, 1
          %s277 = smul.addr %s276, 16
          %s278 = scalar_lea.vmem [#allocation4], %s277
          %s280 = ssub.s32 256, 256
          %281 = vsyncadd %s275, %s280
          %s282 = smul.addr %s23, 2
          %s283 = smul.addr %s282, 128
          %s284 = scalar_lea.hbm %s1, %s283
          %s285 = sshll.u32 %s278, 4
          %s286 = int_to_ptr.vmem [resolvable:$true] %s285
          %291 = dma.hbm_to_vmem [thread:$0]  %s284, 256, %s286, %s275, 128, 128, 8
        $region24: #{tpu_custom_call.1} parent=15 // pred_fallthru
          _
        // Predicated region
        $region25: #{tpu_custom_call.1} parent=15 // pred_check
          %p292 = pneg %p95
        $region26: #{tpu_custom_call.1} parent=15 // pred_check_branch
          %294 = sbr.rel (%p292) target = $region28
        $region27: #{tpu_custom_call.1} parent=15 // pred_region
          %s295 = sand.u32 %s23, 1
          %s296 = scalar_lea.sflag [#allocation5], %s295
          %s297 = sand.u32 %s85, 1
          %s298 = smul.addr %s297, 16
          %s299 = scalar_lea.vmem [#allocation6], %s298
          %s301 = ssub.s32 256, 256
          %302 = vsyncadd %s296, %s301
          %s303 = smul.addr %s23, 2
          %s304 = smul.addr %s303, 128
          %s305 = scalar_lea.hbm %s2, %s304
          %s306 = sshll.u32 %s299, 4
          %s307 = int_to_ptr.vmem [resolvable:$true] %s306
          %312 = dma.hbm_to_vmem [thread:$0]  %s305, 256, %s307, %s296, 128, 128, 8
        $region28: #{tpu_custom_call.1} parent=15 // pred_fallthru
          _
        // Predicated region
        $region29: #{tpu_custom_call.1} parent=15 // pred_check
          %p313 = pneg %p121
        $region30: #{tpu_custom_call.1} parent=15 // pred_check_branch
          %315 = sbr.rel (%p313) target = $region32
        $region31: #{tpu_custom_call.1} parent=15 // pred_region
          %s316 = sand.u32 %s111, 1
          %s317 = scalar_lea.sflag [#allocation8], %s316
          %s318 = sand.u32 %s111, 1
          %s319 = smul.addr %s318, 16
          %s320 = scalar_lea.vmem [#allocation7], %s319
          %s322 = ssub.s32 256, 256
          %323 = vsyncadd %s317, %s322
          %s324 = smul.addr %s23, 2
          %s325 = smul.addr %s324, 128
          %s326 = scalar_lea.hbm %s3, %s325
          %s327 = sshll.u32 %s320, 4
          %s328 = int_to_ptr.vmem [resolvable:$true] %s327
          %333 = dma.hbm_to_vmem [thread:$0]  %s326, 256, %s328, %s317, 128, 128, 8
        $region32: #{tpu_custom_call.1} parent=15 // pred_fallthru
          _
      $region16: #{tpu_custom_call.1} parent=5 // pred_fallthru
        _
      %p334 = scmp.le.s32.totalorder 1, %s23
      %p335 = scmp.lt.s32.totalorder %s23, 9
      %p336 = pnand %p334, %p335
      %p337 = pneg %p336
      // Predicated region
      $region33: #{tpu_custom_call.1} parent=5 // pred_check
        _
      $region34: #{tpu_custom_call.1} parent=5 // pred_check_branch
        %339 = sbr.rel (%p336) target = $region36
      $region35: #{tpu_custom_call.1} parent=5 // pred_region
        %s340 = ssub.s32 %s23, 1
        %s341 = sand.u32 %s36, 1
        %s342 = scalar_lea.sflag [#allocation3], %s341
        %s343 = sand.u32 %s36, 1
        %s344 = smul.addr %s343, 16
        %s345 = scalar_lea.vmem [#allocation2], %s344
        // Predicated region
        $region37: #{tpu_custom_call.1} parent=35 // pred_check
          %p346 = pneg %p49
        $region38: #{tpu_custom_call.1} parent=35 // pred_check_branch
          %348 = sbr.rel (%p346) target = $region40
        $region39: #{tpu_custom_call.1} parent=35 // pred_region
          %349 = dma.done %s342, 256
        $region40: #{tpu_custom_call.1} parent=35 // pred_fallthru
          _
        %s350 = sand.u32 %s28, 1
        %s351 = scalar_lea.sflag [#allocation5], %s350
        %s352 = sand.u32 %s62, 1
        %s353 = smul.addr %s352, 16
        %s354 = scalar_lea.vmem [#allocation4], %s353
        // Predicated region
        $region41: #{tpu_custom_call.1} parent=35 // pred_check
          %p355 = pneg %p75
        $region42: #{tpu_custom_call.1} parent=35 // pred_check_branch
          %357 = sbr.rel (%p355) target = $region44
        $region43: #{tpu_custom_call.1} parent=35 // pred_region
          %358 = dma.done %s351, 256
        $region44: #{tpu_custom_call.1} parent=35 // pred_fallthru
          _
        %s359 = sand.u32 %s28, 1
        %s360 = scalar_lea.sflag [#allocation5], %s359
        %s361 = sand.u32 %s88, 1
        %s362 = smul.addr %s361, 16
        %s363 = scalar_lea.vmem [#allocation6], %s362
        // Predicated region
        $region45: #{tpu_custom_call.1} parent=35 // pred_check
          %p364 = pneg %p101
        $region46: #{tpu_custom_call.1} parent=35 // pred_check_branch
          %366 = sbr.rel (%p364) target = $region48
        $region47: #{tpu_custom_call.1} parent=35 // pred_region
          %367 = dma.done %s360, 256
        $region48: #{tpu_custom_call.1} parent=35 // pred_fallthru
          _
        %s368 = sand.u32 %s114, 1
        %s369 = scalar_lea.sflag [#allocation8], %s368
        %s370 = sand.u32 %s114, 1
        %s371 = smul.addr %s370, 16
        %s372 = scalar_lea.vmem [#allocation7], %s371
        // Predicated region
        $region49: #{tpu_custom_call.1} parent=35 // pred_check
          %p373 = pneg %p127
        $region50: #{tpu_custom_call.1} parent=35 // pred_check_branch
          %375 = sbr.rel (%p373) target = $region52
        $region51: #{tpu_custom_call.1} parent=35 // pred_region
          %376 = dma.done %s369, 256
        $region52: #{tpu_custom_call.1} parent=35 // pred_fallthru
          _
        %s377 = sand.u32 %s36, 1
        %s378 = scalar_lea.sflag [#allocation3], %s377
        %s379 = sand.u32 %s36, 1
        %s380 = smul.addr %s379, 16
        %s381 = scalar_lea.vmem [#allocation2], %s380
        %p382 = pneg %p49
        %p383 = pneg %p46
        %s384 = sand.u32 %s28, 1
        %s385 = scalar_lea.sflag [#allocation5], %s384
        %s386 = sand.u32 %s62, 1
        %s387 = smul.addr %s386, 16
        %s388 = scalar_lea.vmem [#allocation4], %s387
        %p389 = pneg %p75
        %p390 = pneg %p72
        %s391 = sand.u32 %s28, 1
        %s392 = scalar_lea.sflag [#allocation5], %s391
        %s393 = sand.u32 %s88, 1
        %s394 = smul.addr %s393, 16
        %s395 = scalar_lea.vmem [#allocation6], %s394
        %p396 = pneg %p101
        %p397 = pneg %p98
        %s398 = sand.u32 %s114, 1
        %s399 = scalar_lea.sflag [#allocation8], %s398
        %s400 = sand.u32 %s114, 1
        %s401 = smul.addr %s400, 16
        %s402 = scalar_lea.vmem [#allocation7], %s401
        %p403 = pneg %p127
        %p404 = pneg %p124
        %p405 = pneg %p153
        %p406 = pneg %p150
        %p407 = scmp.lt.s32.totalorder %s28, 7
        %s408 = scalar_select %p407, %s28, 7
        %s409 = smul.addr %s408, 3
        %s410 = smul.addr %s409, 8
        %s411 = scalar_lea.vmem %s4, %s410
        %p412 = pneg %p179
        %p413 = pneg %p176
        %p414 = scmp.lt.s32.totalorder %s28, 7
        %s415 = scalar_select %p414, %s28, 7
        %s416 = smul.addr %s415, 3
        %s417 = smul.addr %s416, 8
        %s418 = scalar_lea.vmem %s5, %s417
        %p419 = pneg %p205
        %p420 = pneg %p202
        %p421 = scmp.lt.s32.totalorder %s28, 7
        %s422 = scalar_select %p421, %s28, 7
        %s423 = smul.addr %s422, 3
        %s424 = smul.addr %s423, 8
        %s425 = scalar_lea.vmem %s6, %s424
        %p426 = pneg %p231
        %p427 = pneg %p228
        %p428 = scmp.lt.s32.totalorder %s28, 7
        %s429 = scalar_select %p428, %s28, 7
        %s430 = smul.addr %s429, 3
        %s431 = smul.addr %s430, 8
        %s432 = scalar_lea.vmem %s7, %s431
        %p433 = scmp.lt.s32.totalorder %s28, 7
        %s434 = scalar_select %p433, %s28, 7
        %s435 = smul.addr %s434, 3
        %s436 = smul.addr %s435, 8
        %s437 = scalar_lea.vmem %s4, %s436
        %p438 = scmp.lt.s32.totalorder %s28, 7
        %s439 = scalar_select %p438, %s28, 7
        %s440 = smul.addr %s439, 3
        %s441 = smul.addr %s440, 8
        %s442 = scalar_lea.vmem %s5, %s441
        %p443 = scmp.lt.s32.totalorder %s28, 7
        %s444 = scalar_select %p443, %s28, 7
        %s445 = smul.addr %s444, 3
        %s446 = smul.addr %s445, 8
        %s447 = scalar_lea.vmem %s6, %s446
        %p448 = scmp.lt.s32.totalorder %s28, 7
        %s449 = scalar_select %p448, %s28, 7
        %s450 = smul.addr %s449, 3
        %s451 = smul.addr %s450, 8
        %s452 = scalar_lea.vmem %s7, %s451
        %vm453 = vcmask 149504
        %454 = vst.msk [vmem:[%s437] sm:$0x7] %vm453, 0.0
        %v455 = vld [vmem:[%s345] sm:$0xff]
        %v456 = vld [vmem:[%s345 + $0x8] sm:$0xff]
        %459 = vrot.lane.b32.xlu0 %v455, 1
        %v460 = vpop.permute.xlu0 %459
        %461 = vrot.lane.b32.xlu0 %v456, 1
        %v462 = vpop.permute.xlu0 %461
        %vm465 = vcmask 7168
        %v466 = vsel %vm465, 0.0, %v460
        %v467 = vsel %vm465, 0.0, %v462
        %vm468 = vcmask 138240
        %v469 = vsel %vm468, %v466, 0.0
        %v470 = vsel %vm468, %v467, 0.0
        %vm471 = vcmask 154624
        %472 = vst.msk [vmem:[%s437 + $0x3] sm:$0xff] %vm471, %v469
        %473 = vst.msk [vmem:[%s437 + $0xb] sm:$0xff] %vm471, %v470
        %vm474 = vcmask 150528
        %475 = vst.msk [vmem:[%s437 + $0x13] sm:$0xf] %vm474, 0.0
        %476 = vst.msk [vmem:[%s442] sm:$0x7] %vm453, 0.0
        %v477 = vld [vmem:[%s354] sm:$0xff]
        %v478 = vld [vmem:[%s354 + $0x8] sm:$0xff]
        %481 = vrot.lane.b32.xlu0 %v477, 1
        %v482 = vpop.permute.xlu0 %481
        %483 = vrot.lane.b32.xlu0 %v478, 1
        %v484 = vpop.permute.xlu0 %483
        %v487 = vsel %vm465, 0.0, %v482
        %v488 = vsel %vm465, 0.0, %v484
        %v489 = vsel %vm468, %v487, 0.0
        %v490 = vsel %vm468, %v488, 0.0
        %491 = vst.msk [vmem:[%s442 + $0x3] sm:$0xff] %vm471, %v489
        %492 = vst.msk [vmem:[%s442 + $0xb] sm:$0xff] %vm471, %v490
        %493 = vst.msk [vmem:[%s442 + $0x13] sm:$0xf] %vm474, 0.0
        %494 = vst.msk [vmem:[%s447] sm:$0x7] %vm453, 0.0
        %v495 = vld [vmem:[%s363] sm:$0xff]
        %v496 = vld [vmem:[%s363 + $0x8] sm:$0xff]
        %499 = vrot.lane.b32.xlu0 %v495, 1
        %v500 = vpop.permute.xlu0 %499
        %501 = vrot.lane.b32.xlu0 %v496, 1
        %v502 = vpop.permute.xlu0 %501
        %v505 = vsel %vm465, 0.0, %v500
        %v506 = vsel %vm465, 0.0, %v502
        %v507 = vsel %vm468, %v505, 0.0
        %v508 = vsel %vm468, %v506, 0.0
        %509 = vst.msk [vmem:[%s447 + $0x3] sm:$0xff] %vm471, %v507
        %510 = vst.msk [vmem:[%s447 + $0xb] sm:$0xff] %vm471, %v508
        %511 = vst.msk [vmem:[%s447 + $0x13] sm:$0xf] %vm474, 0.0
        %512 = vst.msk [vmem:[%s452] sm:$0x7] %vm453, 0.0
        %v513 = vld [vmem:[%s372] sm:$0xff]
        %v514 = vld [vmem:[%s372 + $0x8] sm:$0xff]
        %517 = vrot.lane.b32.xlu0 %v513, 1
        %v518 = vpop.permute.xlu0 %517
        %519 = vrot.lane.b32.xlu0 %v514, 1
        %v520 = vpop.permute.xlu0 %519
        %v523 = vsel %vm465, 0.0, %v518
        %v524 = vsel %vm465, 0.0, %v520
        %v525 = vsel %vm468, %v523, 0.0
        %v526 = vsel %vm468, %v524, 0.0
        %527 = vst.msk [vmem:[%s452 + $0x3] sm:$0xff] %vm471, %v525
        %528 = vst.msk [vmem:[%s452 + $0xb] sm:$0xff] %vm471, %v526
        %529 = vst.msk [vmem:[%s452 + $0x13] sm:$0xf] %vm474, 0.0
        %p530 = scmp.lt.s32.totalorder %s28, 7
        %s531 = scalar_select %p530, %s28, 7
        %s532 = smul.addr %s531, 3
        %s533 = smul.addr %s532, 8
        %s534 = scalar_lea.vmem %s4, %s533
        %p535 = scmp.lt.s32.totalorder %s28, 7
        %s536 = scalar_select %p535, %s28, 7
        %s537 = smul.addr %s536, 3
        %s538 = smul.addr %s537, 8
        %s539 = scalar_lea.vmem %s5, %s538
        %p540 = scmp.lt.s32.totalorder %s28, 7
        %s541 = scalar_select %p540, %s28, 7
        %s542 = smul.addr %s541, 3
        %s543 = smul.addr %s542, 8
        %s544 = scalar_lea.vmem %s6, %s543
        %p545 = scmp.lt.s32.totalorder %s28, 7
        %s546 = scalar_select %p545, %s28, 7
        %s547 = smul.addr %s546, 3
        %s548 = smul.addr %s547, 8
        %s549 = scalar_lea.vmem %s7, %s548
        // Predicated region
        $region53: #{tpu_custom_call.1} parent=35 // pred_check
          %p550 = pneg %p150
        $region54: #{tpu_custom_call.1} parent=35 // pred_check_branch
          %552 = sbr.rel (%p550) target = $region56
        $region55: #{tpu_custom_call.1} parent=35 // pred_region
          _
        $region56: #{tpu_custom_call.1} parent=35 // pred_fallthru
          _
        // Predicated region
        $region57: #{tpu_custom_call.1} parent=35 // pred_check
          %p553 = pneg %p176
        $region58: #{tpu_custom_call.1} parent=35 // pred_check_branch
          %555 = sbr.rel (%p553) target = $region60
        $region59: #{tpu_custom_call.1} parent=35 // pred_region
          _
        $region60: #{tpu_custom_call.1} parent=35 // pred_fallthru
          _
        // Predicated region
        $region61: #{tpu_custom_call.1} parent=35 // pred_check
          %p556 = pneg %p202
        $region62: #{tpu_custom_call.1} parent=35 // pred_check_branch
          %558 = sbr.rel (%p556) target = $region64
        $region63: #{tpu_custom_call.1} parent=35 // pred_region
          _
        $region64: #{tpu_custom_call.1} parent=35 // pred_fallthru
          _
        // Predicated region
        $region65: #{tpu_custom_call.1} parent=35 // pred_check
          %p559 = pneg %p228
        $region66: #{tpu_custom_call.1} parent=35 // pred_check_branch
          %561 = sbr.rel (%p559) target = $region68
        $region67: #{tpu_custom_call.1} parent=35 // pred_region
          _
        $region68: #{tpu_custom_call.1} parent=35 // pred_fallthru
          _
      $region36: #{tpu_custom_call.1} parent=5 // pred_fallthru
        _
      %p562 = scmp.le.s32.totalorder 2, %s23
      // Predicated region
      $region69: #{tpu_custom_call.1} parent=5 // pred_check
        %p563 = pneg %p562
      $region70: #{tpu_custom_call.1} parent=5 // pred_check_branch
        %565 = sbr.rel (%p563) target = $region72
      $region71: #{tpu_custom_call.1} parent=5 // pred_region
        %s566 = ssub.s32 %s23, 2
        // Predicated region
        $region73: #{tpu_custom_call.1} parent=71 // pred_check
          %p567 = pneg %p156
        $region74: #{tpu_custom_call.1} parent=71 // pred_check_branch
          %569 = sbr.rel (%p567) target = $region76
        $region75: #{tpu_custom_call.1} parent=71 // pred_region
          %p570 = scmp.lt.s32.totalorder %s29, 7
          %s571 = scalar_select %p570, %s29, 7
          %s572 = smul.addr %s571, 3
          %s573 = smul.addr %s572, 8
          %s574 = scalar_lea.vmem %s4, %s573
        $region76: #{tpu_custom_call.1} parent=71 // pred_fallthru
          _
        // Predicated region
        $region77: #{tpu_custom_call.1} parent=71 // pred_check
          %p575 = pneg %p182
        $region78: #{tpu_custom_call.1} parent=71 // pred_check_branch
          %577 = sbr.rel (%p575) target = $region80
        $region79: #{tpu_custom_call.1} parent=71 // pred_region
          %p578 = scmp.lt.s32.totalorder %s29, 7
          %s579 = scalar_select %p578, %s29, 7
          %s580 = smul.addr %s579, 3
          %s581 = smul.addr %s580, 8
          %s582 = scalar_lea.vmem %s5, %s581
        $region80: #{tpu_custom_call.1} parent=71 // pred_fallthru
          _
        // Predicated region
        $region81: #{tpu_custom_call.1} parent=71 // pred_check
          %p583 = pneg %p208
        $region82: #{tpu_custom_call.1} parent=71 // pred_check_branch
          %585 = sbr.rel (%p583) target = $region84
        $region83: #{tpu_custom_call.1} parent=71 // pred_region
          %p586 = scmp.lt.s32.totalorder %s29, 7
          %s587 = scalar_select %p586, %s29, 7
          %s588 = smul.addr %s587, 3
          %s589 = smul.addr %s588, 8
          %s590 = scalar_lea.vmem %s6, %s589
        $region84: #{tpu_custom_call.1} parent=71 // pred_fallthru
          _
        // Predicated region
        $region85: #{tpu_custom_call.1} parent=71 // pred_check
          %p591 = pneg %p234
        $region86: #{tpu_custom_call.1} parent=71 // pred_check_branch
          %593 = sbr.rel (%p591) target = $region88
        $region87: #{tpu_custom_call.1} parent=71 // pred_region
          %p594 = scmp.lt.s32.totalorder %s29, 7
          %s595 = scalar_select %p594, %s29, 7
          %s596 = smul.addr %s595, 3
          %s597 = smul.addr %s596, 8
          %s598 = scalar_lea.vmem %s7, %s597
        $region88: #{tpu_custom_call.1} parent=71 // pred_fallthru
          _
      $region72: #{tpu_custom_call.1} parent=5 // pred_fallthru
        _
    $region6: #{tpu_custom_call.1} parent=1 // loop_footer
      %s27 = sadd.s32 1, %s23
    $region7: #{tpu_custom_call.1} parent=1 // loop_footer_branch
      %22 = sbr.rel target = $region3
    $region8: #{tpu_custom_call.1} parent=1 // loop_exit
      _
    %599 = vsyncpa [#allocation3], 1
    %s600 = scalar_lea.sflag [#allocation3], 1
    %601 = vsyncpa %s600, 1
    %602 = vsyncpa [#allocation5], 1
    %s603 = scalar_lea.sflag [#allocation5], 1
    %604 = vsyncpa %s603, 1
    %605 = vsyncpa [#allocation8], 1
    %s606 = scalar_lea.sflag [#allocation8], 1
    %607 = vsyncpa %s606, 1

</llo_original>
